<compile_context>
chip_gen: v7x
topology: tpu7x:2x2x1
jax: 0.10.0
libtpu: 0.0.40
codegen_flags: <defaults>
</compile_context>

<pallas_src>
import jax
import jax.numpy as jnp
from jax.experimental import pallas as pl
from jax.experimental.pallas import tpu as pltpu


def _vmem_capacity_bytes():
    """Per-core VMEM capacity; conservative fallback if the query is unavailable."""
    try:
        info = pltpu.get_tpu_info()
        cap = getattr(info, "vmem_capacity_bytes", None)
        if cap:
            return int(cap)
    except Exception:
        pass
    return 64 * 1024 * 1024  # v7x per-TC; safe lower bound for older parts


def _choose_tiles(B, C, L, L_pad, L_s1, L_out, itemsize, budget):
    """Pick (Bt, Ct) block dims.

    Ct: lane tile — a multiple of 128 dividing C when possible, otherwise the
        largest divisor of C whose block fits the budget (bounded fallback).
    Bt: grows blocks to amortize per-step overhead, capped so large problems
        still get a few grid steps for pipelining / megacore sharding.
    """

    def block_bytes(bt, ct):
        io = 2 * bt * (L + L_out) * ct * itemsize      # double-buffered in/out blocks
        scratch = bt * L_pad * ct * 4                  # padded f32 scratch
        temps = 2 * bt * L_s1 * ct * 4                 # accumulator + shifted-slice temps
        return io + scratch + temps

    def divisors(n):
        return [d for d in range(1, n + 1) if n % d == 0]

    if C % 128 == 0:
        c_cands = [c for c in range(128, C + 1, 128) if C % c == 0]
    else:
        c_cands = divisors(C)
    c_fit = [c for c in c_cands if block_bytes(1, c) <= budget]
    ct = max(c_fit) if c_fit else min(c_cands)
    # TODO(synk): if even the smallest channel tile overflows (very long L), add an
    #   L-tile grid axis with a (K-1)*stride-row halo via manual DMA (pl.ANY +
    #   make_async_copy) instead of full-L blocks.

    total_in = B * C * L * itemsize
    target_steps = 4
    desired_in = max(512 * 1024, -(-total_in // target_steps))
    b_fit = [
        bt for bt in divisors(B)
        if block_bytes(bt, ct) <= budget
        and bt * ct * L * itemsize <= max(desired_in, ct * L * itemsize)
    ]
    bt = max(b_fit) if b_fit else 1
    return bt, ct


def _moving_avg_core(x, kernel_size, stride):
    """Moving average along axis 1 of a (B, L, C) array; C should be lane-friendly."""
    B, L, C = x.shape
    pad = (kernel_size - 1) // 2
    L_pad = L + 2 * pad
    assert L_pad >= kernel_size, "sequence too short for this kernel_size"
    L_s1 = L_pad - kernel_size + 1                 # stride-1 window count
    L_out = (L_pad - kernel_size) // stride + 1
    itemsize = jnp.dtype(x.dtype).itemsize
    inv_k = 1.0 / float(kernel_size)

    cap = _vmem_capacity_bytes()
    budget = cap // 3
    vmem_limit = min(cap, max(32 * 1024 * 1024, int(cap * 0.7)))

    Bt, Ct = _choose_tiles(B, C, L, L_pad, L_s1, L_out, itemsize, budget)

    def kernel(x_ref, o_ref, xp_ref):
        # One dense load of the pipelined HBM block; the edge-replicated padded
        # sequence is assembled in VMEM scratch (no padded copy touches HBM).
        # TODO(synk): keep xp_ref in bf16 on v6e/v7x when the input is bf16
        #   (halves tap bytes); v5e has no bf16 VALU so keep f32 there.
        xv = x_ref[...].astype(jnp.float32)                      # (Bt, L, Ct)
        xp_ref[:, pl.ds(pad, L), :] = xv
        if pad > 0:
            xp_ref[:, pl.ds(0, pad), :] = jnp.broadcast_to(
                xv[:, 0:1, :], (Bt, pad, Ct))
            xp_ref[:, pl.ds(pad + L, pad), :] = jnp.broadcast_to(
                xv[:, L - 1:L, :], (Bt, pad, Ct))

        if kernel_size < 8:
            # Small K: unrolled unit-stride taps on the VMEM-resident scratch.
            acc = xp_ref[:, pl.ds(0, L_s1), :]
            for k in range(1, kernel_size):
                acc = acc + xp_ref[:, pl.ds(k, L_s1), :]
        else:
            # Large K: pairwise-doubling run sums built in place in the scratch
            # (ceil(log2 K) passes) plus popcount(K)-1 combines — far fewer
            # misaligned sublane tap loads/adds than the K-1 naive loop.
            acc = None
            rem, run, off = kernel_size, 1, 0
            while rem > 0:
                if rem & 1:
                    term = xp_ref[:, pl.ds(off, L_s1), :]
                    acc = term if acc is None else acc + term
                    off += run
                rem >>= 1
                if rem > 0:
                    n = L_pad - 2 * run + 1
                    xp_ref[:, pl.ds(0, n), :] = (
                        xp_ref[:, pl.ds(0, n), :] + xp_ref[:, pl.ds(run, n), :])
                    run *= 2

        if stride > 1:
            # Subsample the accumulator value directly — no dense stride-1
            # scratch round-trip.
            acc = acc[:, ::stride, :][:, :L_out, :]
        o_ref[...] = (acc * inv_k).astype(o_ref.dtype)

    return pl.pallas_call(
        kernel,
        out_shape=jax.ShapeDtypeStruct((B, L_out, C), x.dtype),
        grid_spec=pltpu.PrefetchScalarGridSpec(
            num_scalar_prefetch=0,
            grid=(B // Bt, C // Ct),
            in_specs=[pl.BlockSpec((Bt, L, Ct), lambda b, c: (b, 0, c))],
            out_specs=pl.BlockSpec((Bt, L_out, Ct), lambda b, c: (b, 0, c)),
            scratch_shapes=[pltpu.VMEM((Bt, L_pad, Ct), jnp.float32)],
        ),
        compiler_params=pltpu.CompilerParams(
            dimension_semantics=("parallel", "parallel"),
            vmem_limit_bytes=vmem_limit,
        ),
    )(x)


def moving_avg_pallas(x, kernel_size, stride):
    """Moving average over time with edge-replication padding (PyTorch semantics).

    x: (B, L, C) -> (B, L_out, C), L_out = (L + 2*((K-1)//2) - K)//stride + 1.
    """
    assert kernel_size >= 1 and stride >= 1
    B, L, C = x.shape

    if C < 128:
        # Lane-dense path: collapse (B, C) into the lane axis and pad to a
        # multiple of 128 so output stores are full-width (no masked vst.msk).
        N = B * C
        Np = -(-N // 128) * 128
        xt = jnp.transpose(x, (1, 0, 2)).reshape(L, N)
        if Np != N:
            xt = jnp.pad(xt, ((0, 0), (0, Np - N)))
        out2 = _moving_avg_core(xt[None], kernel_size, stride)      # (1, L_out, Np)
        L_out = out2.shape[1]
        out2 = out2[0, :, :N].reshape(L_out, B, C)
        return jnp.transpose(out2, (1, 0, 2))

    return _moving_avg_core(x, kernel_size, stride)


def moving_avg_ref(x, kernel_size, stride):
    """Pure-JAX reference (mirrors torch AvgPool1d with edge-replicate pad)."""
    pad = (kernel_size - 1) // 2
    front = jnp.repeat(x[:, 0:1, :], pad, axis=1)
    end = jnp.repeat(x[:, -1:, :], pad, axis=1)
    xp = jnp.concatenate([front, x, end], axis=1)
    L_pad = xp.shape[1]
    L_out = (L_pad - kernel_size) // stride + 1
    windows = [
        xp[:, t * stride:t * stride + kernel_size, :].mean(axis=1, keepdims=True)
        for t in range(L_out)
    ]
    return jnp.concatenate(windows, axis=1)


if __name__ == "__main__":
    key = jax.random.PRNGKey(0)
    configs = [
        # (B, L, C, kernel_size, stride)
        (2, 16, 32, 5, 1),     # DLSTM-style: C<128 -> lane-collapse path, small odd K
        (2, 16, 32, 4, 2),     # even K + strided pooling, collapse path
        (2, 32, 256, 25, 1),   # Autoformer-style wide window -> log-step tree, 3-D path
        (2, 24, 160, 7, 3),    # C >= 128 but not a 128-multiple -> bounded divisor fallback
    ]
    for i, (B, L, C, K, S) in enumerate(configs):
        k = jax.random.fold_in(key, i)
        x = jax.random.normal(k, (B, L, C), dtype=jnp.float32)
        out = jax.block_until_ready(moving_avg_pallas(x, K, S))
        ref = moving_avg_ref(x, K, S)
        assert out.shape == ref.shape, (out.shape, ref.shape)
        assert jnp.allclose(out, ref, atol=1e-4, rtol=1e-5), \
            f"mismatch vs reference for config {(B, L, C, K, S)}"
    print("KERNEL_OK")
</pallas_src>

<mosaic_0001>
module attributes {stable_mosaic.version = 11 : i64} {
  func.func @kernel(%arg0: i32, %arg1: i32, %arg2: memref<1x16x128xf32, #tpu.memory_space<vmem>>, %arg3: memref<1x16x128xf32, #tpu.memory_space<vmem>>, %arg4: memref<1x20x128xf32, #tpu.memory_space<vmem>>) attributes {dimension_semantics = [#tpu.dimension_semantics<parallel>, #tpu.dimension_semantics<parallel>], iteration_bounds = array<i64: 1, 1>, scalar_prefetch = 0 : i64, scratch_operands = 1 : i64, tpu.core_type = #tpu.core_type<tc>, window_params = [{transform_indices = @transform_0, window_bounds = array<i64: 1, 16, 128>}, {transform_indices = @transform_1, window_bounds = array<i64: 1, 16, 128>}]} {
    %c0 = arith.constant 0 : index
    %c0_0 = arith.constant 0 : index
    %c0_1 = arith.constant 0 : index
    %0 = vector.load %arg2[%c0, %c0_0, %c0_1] : memref<1x16x128xf32, #tpu.memory_space<vmem>>, vector<1x16x128xf32>
    %c0_2 = arith.constant 0 : index
    %c2 = arith.constant 2 : index
    %c0_3 = arith.constant 0 : index
    %1 = vector.load %arg4[%c0_2, %c2, %c0_3] : memref<1x20x128xf32, #tpu.memory_space<vmem>>, vector<1x16x128xf32>
    tpu.vector_store %arg4[%c0_2, %c2, %c0_3], %0 {strides = array<i32>} : memref<1x20x128xf32, #tpu.memory_space<vmem>>, vector<1x16x128xf32>,
    %2 = vector.extract_strided_slice %0 {offsets = [0, 0, 0], sizes = [1, 1, 128], strides = [1, 1, 1]} : vector<1x16x128xf32> to vector<1x1x128xf32>
    %3 = vector.shape_cast %2 : vector<1x1x128xf32> to vector<1x1x128xf32>
    %4 = vector.broadcast %3 : vector<1x1x128xf32> to vector<1x2x128xf32>
    %c0_4 = arith.constant 0 : index
    %c0_5 = arith.constant 0 : index
    %c0_6 = arith.constant 0 : index
    %5 = vector.load %arg4[%c0_4, %c0_5, %c0_6] : memref<1x20x128xf32, #tpu.memory_space<vmem>>, vector<1x2x128xf32>
    tpu.vector_store %arg4[%c0_4, %c0_5, %c0_6], %4 {strides = array<i32>} : memref<1x20x128xf32, #tpu.memory_space<vmem>>, vector<1x2x128xf32>,
    %6 = vector.extract_strided_slice %0 {offsets = [0, 15, 0], sizes = [1, 1, 128], strides = [1, 1, 1]} : vector<1x16x128xf32> to vector<1x1x128xf32>
    %7 = vector.shape_cast %6 : vector<1x1x128xf32> to vector<1x1x128xf32>
    %8 = vector.broadcast %7 : vector<1x1x128xf32> to vector<1x2x128xf32>
    %c0_7 = arith.constant 0 : index
    %c18 = arith.constant 18 : index
    %c0_8 = arith.constant 0 : index
    %9 = vector.load %arg4[%c0_7, %c18, %c0_8] : memref<1x20x128xf32, #tpu.memory_space<vmem>>, vector<1x2x128xf32>
    tpu.vector_store %arg4[%c0_7, %c18, %c0_8], %8 {strides = array<i32>} : memref<1x20x128xf32, #tpu.memory_space<vmem>>, vector<1x2x128xf32>,
    %c0_9 = arith.constant 0 : index
    %c0_10 = arith.constant 0 : index
    %c0_11 = arith.constant 0 : index
    %10 = vector.load %arg4[%c0_9, %c0_10, %c0_11] : memref<1x20x128xf32, #tpu.memory_space<vmem>>, vector<1x16x128xf32>
    %c0_12 = arith.constant 0 : index
    %c1 = arith.constant 1 : index
    %c0_13 = arith.constant 0 : index
    %11 = vector.load %arg4[%c0_12, %c1, %c0_13] : memref<1x20x128xf32, #tpu.memory_space<vmem>>, vector<1x16x128xf32>
    %12 = arith.addf %10, %11 : vector<1x16x128xf32>
    %c0_14 = arith.constant 0 : index
    %c2_15 = arith.constant 2 : index
    %c0_16 = arith.constant 0 : index
    %13 = vector.load %arg4[%c0_14, %c2_15, %c0_16] : memref<1x20x128xf32, #tpu.memory_space<vmem>>, vector<1x16x128xf32>
    %14 = arith.addf %12, %13 : vector<1x16x128xf32>
    %c0_17 = arith.constant 0 : index
    %c3 = arith.constant 3 : index
    %c0_18 = arith.constant 0 : index
    %15 = vector.load %arg4[%c0_17, %c3, %c0_18] : memref<1x20x128xf32, #tpu.memory_space<vmem>>, vector<1x16x128xf32>
    %16 = arith.addf %14, %15 : vector<1x16x128xf32>
    %c0_19 = arith.constant 0 : index
    %c4 = arith.constant 4 : index
    %c0_20 = arith.constant 0 : index
    %17 = vector.load %arg4[%c0_19, %c4, %c0_20] : memref<1x20x128xf32, #tpu.memory_space<vmem>>, vector<1x16x128xf32>
    %18 = arith.addf %16, %17 : vector<1x16x128xf32>
    %cst = arith.constant 2.000000e-01 : f32
    %19 = vector.broadcast %cst : f32 to vector<1x16x128xf32>
    %20 = arith.mulf %18, %19 : vector<1x16x128xf32>
    %c0_21 = arith.constant 0 : index
    %c0_22 = arith.constant 0 : index
    %c0_23 = arith.constant 0 : index
    %21 = vector.load %arg3[%c0_21, %c0_22, %c0_23] : memref<1x16x128xf32, #tpu.memory_space<vmem>>, vector<1x16x128xf32>
    tpu.vector_store %arg3[%c0_21, %c0_22, %c0_23], %20 {strides = array<i32>} : memref<1x16x128xf32, #tpu.memory_space<vmem>>, vector<1x16x128xf32>,
    return
  }
  func.func @transform_0(%arg0: i32, %arg1: i32) -> (i32, i32, i32) {
    %c0_i32 = arith.constant 0 : i32
    %c0_i32_0 = arith.constant 0 : i32
    return %arg0, %c0_i32, %arg1 : i32, i32, i32
  }
  func.func @transform_1(%arg0: i32, %arg1: i32) -> (i32, i32, i32) {
    %c0_i32 = arith.constant 0 : i32
    %c0_i32_0 = arith.constant 0 : i32
    return %arg0, %c0_i32, %arg1 : i32, i32, i32
  }
}

</mosaic_0001>

<llo_original>
// kernel: tpu_custom_call.1
$region0: #{tpu_custom_call.1}
  #allocation0 [shape = 'u32[]', space=smem, size = 0x4, offset = 0x4, fixed_abs, tag = 'smem constant byte address 0x4 - core index']
  #allocation1 [shape = 'u32[144,128]{1,0:T(1,128)}', space=vmem, size = 0x12000, scoped, tag = 'internal scratch']
  #allocation2 [shape = 'f32[1,20,128]{2,1,0:T(8,128)}', space=vmem, size = 0x3000, scoped, tag = 'scratch operand']
  %s0 = inlined_call_operand.hbm [shape: f32[1,16,128], index: 0, kind: input, shape index: {}]
  %s1 = inlined_call_operand.hbm [shape: f32[1,16,128], index: 1, kind: output, shape index: {}]
  %s2 = sld [smem:[#allocation0]]
  $region18: #{tpu_custom_call.1} parent=0
    _
  %s4 = ssub.s32 1, %s2
  %s5 = scalar_select 0, %s4, %s2
  $region1: #{tpu_custom_call.1} parent=0
    #allocation3 [shape = 'u8[8192]{0}', space=vmem, size = 0x2000, scoped, tag = 'input window, operand 0, single buffered']
    #allocation4 [shape = 's32[1]{0}', space=sflag, size = 0x4, scoped, tag = 'scoped memory for tpu_custom_call.1']
    #allocation5 [shape = 's32[1]{0}', space=sflag, size = 0x4, scoped, tag = 'scoped memory for tpu_custom_call.1']
    #allocation6 [shape = 'u8[8192]{0}', space=vmem, size = 0x2000, scoped, tag = 'output window, operand 0, single buffered']
    %6 = vsyncpa [#allocation4], 0
    %7 = vsyncpa [#allocation5], 0
    // Predicated region
    $region2: #{tpu_custom_call.1} parent=1 // pred_check
      _
    $region3: #{tpu_custom_call.1} parent=1 // pred_check_branch
      %9 = sbr.rel (0) target = $region5
    $region4: #{tpu_custom_call.1} parent=1 // pred_region
      %s11 = ssub.s32 256, 256
      %12 = vsyncadd [#allocation4], %s11
      %s13 = sshll.u32 [#allocation3], 4
      %s14 = int_to_ptr.vmem [resolvable:$true] %s13
      %19 = dma.hbm_to_vmem [thread:$0]  %s0, 256, %s14, [#allocation4], 128, 128, 8
    $region5: #{tpu_custom_call.1} parent=1 // pred_fallthru
      _
    // Predicated region
    $region6: #{tpu_custom_call.1} parent=1 // pred_check
      _
    $region7: #{tpu_custom_call.1} parent=1 // pred_check_branch
      %21 = sbr.rel (0) target = $region9
    $region8: #{tpu_custom_call.1} parent=1 // pred_region
      %22 = dma.done [#allocation4], 256
    $region9: #{tpu_custom_call.1} parent=1 // pred_fallthru
      _
    %v23 = vld [vmem:[#allocation3] sm:$0xff]
    %v24 = vld [vmem:[#allocation3 + $0x8] sm:$0xff]
    %25 = vst [vmem:[#allocation2 + $0x2] sm:$0xff] %v23
    %26 = vst [vmem:[#allocation2 + $0xa] sm:$0xff] %v24
    %v27 = vlaneseq
    %v28 = vshrl.u32 %v27, 7
    %v29 = vsub.s32 0, %v28
    %v30 = vrot.slane %v23, %v29
    %31 = vst [vmem:[#allocation2] sm:$0x3] %v30
    %v32 = vlaneseq
    %v33 = vshrl.u32 %v32, 7
    %v34 = vsub.s32 7, %v33
    %v35 = vrot.slane %v24, %v34
    %36 = vst [vmem:[#allocation2 + $0x12] sm:$0x3] %v35
    %v37 = vld [vmem:[#allocation2] sm:$0xff]
    %v38 = vld [vmem:[#allocation2 + $0x8] sm:$0xff]
    %v39 = vld [vmem:[#allocation2 + $0x1] sm:$0xff]
    %v40 = vld [vmem:[#allocation2 + $0x9] sm:$0xff]
    %v41 = vadd.f32 %v37, %v39
    %v42 = vadd.f32 %v38, %v40
    %v43 = vld [vmem:[#allocation2 + $0x2] sm:$0xff]
    %v44 = vld [vmem:[#allocation2 + $0xa] sm:$0xff]
    %v45 = vadd.f32 %v41, %v43
    %v46 = vadd.f32 %v42, %v44
    %v47 = vld [vmem:[#allocation2 + $0x3] sm:$0xff]
    %v48 = vld [vmem:[#allocation2 + $0xb] sm:$0xff]
    %v49 = vadd.f32 %v45, %v47
    %v50 = vadd.f32 %v46, %v48
    %v51 = vld [vmem:[#allocation2 + $0x4] sm:$0xff]
    %v52 = vld [vmem:[#allocation2 + $0xc] sm:$0xff]
    %v53 = vadd.f32 %v49, %v51
    %v54 = vadd.f32 %v50, %v52
    %v55 = vmul.f32 %v53, 0.2
    %v56 = vmul.f32 %v54, 0.2
    %57 = vst [vmem:[#allocation6] sm:$0xff] %v55
    %58 = vst [vmem:[#allocation6 + $0x8] sm:$0xff] %v56
    // Predicated region
    $region10: #{tpu_custom_call.1} parent=1 // pred_check
      _
    $region11: #{tpu_custom_call.1} parent=1 // pred_check_branch
      %60 = sbr.rel (0) target = $region13
    $region12: #{tpu_custom_call.1} parent=1 // pred_region
      %s62 = ssub.s32 256, 256
      %63 = vsyncadd [#allocation5], %s62
      %s64 = sshll.u32 [#allocation6], 4
      %s65 = int_to_ptr.vmem [resolvable:$true] %s64
      %70 = dma.vmem_to_hbm [thread:$0]  %s65, 256, %s1, [#allocation5], 128, 128, 8
    $region13: #{tpu_custom_call.1} parent=1 // pred_fallthru
      _
    // Predicated region
    $region14: #{tpu_custom_call.1} parent=1 // pred_check
      _
    $region15: #{tpu_custom_call.1} parent=1 // pred_check_branch
      %72 = sbr.rel (0) target = $region17
    $region16: #{tpu_custom_call.1} parent=1 // pred_region
      %73 = dma.done [#allocation5], 256
    $region17: #{tpu_custom_call.1} parent=1 // pred_fallthru
      _
    %74 = vsyncpa [#allocation4], 1
    %75 = vsyncpa [#allocation5], 1

</llo_original>
